<compile_context>
chip_gen: v5e
topology: v5e:2x2
jax: 0.10.0
libtpu: 0.0.40
codegen_flags: <defaults>
</compile_context>

<pallas_src>
import jax
import jax.numpy as jnp
from jax.experimental import pallas as pl
from jax.experimental.pallas import tpu as pltpu


def _lau_kernel(q_ref, ub_ref, w1q_ref, w1ub_ref, w1qub_ref, b1_ref,
                w2_ref, b2_ref, ws_ref, out_ref):
    # q_ref:   (BB, 1, E)   queries for this block of batch elements
    # ub_ref:  (BB, T, E)   user behavior sequences
    # w1q/w1ub/w1qub: (E, H1) row-split + recombined pieces of W1
    # b1: (1, H1), w2: (H1, H2), b2: (1, H2), ws: (1, H2)
    # out_ref: (1, BB, T)   attention weights (softmax over T)
    BB, T, E = ub_ref.shape
    H1 = w2_ref.shape[0]
    H2 = w2_ref.shape[1]

    q3 = q_ref[...]                       # (BB, 1, E)
    q = q3.reshape(BB, E)                 # (BB, E)
    ub = ub_ref[...]                      # (BB, T, E)
    qub = q3 * ub                         # (BB, T, E)

    ub_f = ub.reshape(BB * T, E)
    qub_f = qub.reshape(BB * T, E)

    # Layer 1: [q, ub, q-ub, q*ub] @ W1 + b1 via the W1 row-split identity.
    hq = jnp.dot(q, w1q_ref[...],
                 preferred_element_type=jnp.float32) + b1_ref[...]      # (BB, H1)
    h1 = (jnp.dot(ub_f, w1ub_ref[...], preferred_element_type=jnp.float32)
          + jnp.dot(qub_f, w1qub_ref[...],
                    preferred_element_type=jnp.float32))                # (BB*T, H1)
    h1 = h1.reshape(BB, T, H1) + hq[:, None, :]
    h1 = jnp.maximum(h1, 0.0)

    # Layer 2: Linear(H1 -> H2) + ReLU
    h2 = jnp.dot(h1.reshape(BB * T, H1), w2_ref[...],
                 preferred_element_type=jnp.float32) + b2_ref[...]      # (BB*T, H2)
    h2 = jnp.maximum(h2, 0.0).reshape(BB, T, H2)

    # Score: Linear(H2 -> 1) as a VPU multiply + lane (XLU) reduction.
    # The score bias is a constant shift over T and cancels exactly in softmax.
    score = jnp.sum(h2 * ws_ref[...], axis=-1)                          # (BB, T)

    # Softmax over T (torch: softmax(dim=-1) on the squeezed scores).
    m = jnp.max(score, axis=-1, keepdims=True)                          # (BB, 1)
    e = jnp.exp(score - m)
    denom = jnp.sum(e, axis=-1, keepdims=True)
    out_ref[0] = (e / denom).astype(out_ref.dtype)                      # (BB, T)


def local_activation_unit(query, user_behavior, params, *, max_rows=2048):
    """query: (B, 1, E); user_behavior: (B, T, E) -> attention weights (B, T, 1)."""
    B, _, E = query.shape
    T = user_behavior.shape[1]
    w1, b1, w2, b2, ws, bs = params
    H1 = w1.shape[1]
    H2 = w2.shape[1]
    del bs  # constant shift over T cancels exactly under the softmax

    # Trace-time W1 row-split:  [q, ub, q-ub, q*ub] @ W1
    #   = q @ (A + C) + ub @ (B - C) + (q * ub) @ D
    A = w1[0 * E:1 * E]
    Bm = w1[1 * E:2 * E]
    C = w1[2 * E:3 * E]
    D = w1[3 * E:4 * E]
    w1_q = A + C
    w1_ub = Bm - C
    w1_qub = D
    ws_row = ws.reshape(1, H2)  # score weights on the lane axis

    # Batch BB batch elements per grid step so BB*T rows hit the MXU at once.
    bb = max(1, min(B, max_rows // max(T, 1)))
    B_pad = ((B + bb - 1) // bb) * bb
    if B_pad != B:
        pad = ((0, B_pad - B), (0, 0), (0, 0))
        query = jnp.pad(query, pad)
        user_behavior = jnp.pad(user_behavior, pad)
    G = B_pad // bb

    out = pl.pallas_call(
        _lau_kernel,
        out_shape=jax.ShapeDtypeStruct((G, bb, T), jnp.float32),
        grid_spec=pltpu.PrefetchScalarGridSpec(
            num_scalar_prefetch=0,
            grid=(G,),
            in_specs=[
                pl.BlockSpec((bb, 1, E), lambda g: (g, 0, 0)),   # query block
                pl.BlockSpec((bb, T, E), lambda g: (g, 0, 0)),   # behavior block
                pl.BlockSpec((E, H1), lambda g: (0, 0)),         # W1 (A+C), resident
                pl.BlockSpec((E, H1), lambda g: (0, 0)),         # W1 (B-C), resident
                pl.BlockSpec((E, H1), lambda g: (0, 0)),         # W1 D, resident
                pl.BlockSpec((1, H1), lambda g: (0, 0)),         # b1
                pl.BlockSpec((H1, H2), lambda g: (0, 0)),        # W2
                pl.BlockSpec((1, H2), lambda g: (0, 0)),         # b2
                pl.BlockSpec((1, H2), lambda g: (0, 0)),         # W_score row
            ],
            out_specs=pl.BlockSpec((1, bb, T), lambda g: (g, 0, 0)),
        ),
        compiler_params=pltpu.CompilerParams(
            dimension_semantics=("parallel",)),
    )(query, user_behavior, w1_q, w1_ub, w1_qub, b1, w2, b2, ws_row)

    out = out.reshape(B_pad, T)[:B]
    return out[:, :, None]  # (B, T, 1), matching the torch module


def init_params(key, embedding_dim, hidden_units, init_std):
    """Deterministic parameter init mirroring the module's shapes."""
    in_dim = 4 * embedding_dim
    dims = [in_dim] + list(hidden_units)
    keys = jax.random.split(key, 2 * len(hidden_units) + 1)
    params = []
    for i in range(len(hidden_units)):
        w = init_std * jax.random.normal(
            keys[2 * i], (dims[i], dims[i + 1]), dtype=jnp.float32)
        b = 0.01 * jax.random.normal(
            keys[2 * i + 1], (1, dims[i + 1]), dtype=jnp.float32)
        params.extend([w, b])
    ws = 0.05 * jax.random.normal(
        keys[-1], (hidden_units[-1], 1), dtype=jnp.float32)
    bs = jnp.full((1, 1), 0.3, dtype=jnp.float32)  # cancels under softmax
    params.extend([ws, bs])
    return tuple(params)


def _reference(query, user_behavior, params):
    """Plain-JAX reference mirroring the torch forward (for validation)."""
    w1, b1, w2, b2, ws, bs = params
    B, _, E = query.shape
    T = user_behavior.shape[1]
    hi = jax.lax.Precision.HIGHEST
    queries = jnp.broadcast_to(query, (B, T, E))
    att_in = jnp.concatenate(
        [queries, user_behavior, queries - user_behavior,
         queries * user_behavior], axis=-1)
    h = jnp.maximum(jnp.dot(att_in, w1, precision=hi) + b1, 0.0)
    h = jnp.maximum(jnp.dot(h, w2, precision=hi) + b2, 0.0)
    score = (jnp.dot(h, ws, precision=hi) + bs)[..., 0]
    return jax.nn.softmax(score, axis=-1)[..., None]


if __name__ == "__main__":
    # Small shapes consistent with the module: B=2, T=8, embedding_dim=32.
    B, T, E = 2, 8, 32
    hidden_units = [64, 32]
    init_std = 0.02

    key = jax.random.PRNGKey(0)
    kq, kub, kp = jax.random.split(key, 3)
    query = jax.random.normal(kq, (B, 1, E), dtype=jnp.float32)
    user_behavior = jax.random.normal(kub, (B, T, E), dtype=jnp.float32)
    params = init_params(kp, E, hidden_units, init_std)

    out = local_activation_unit(query, user_behavior, params)
    out = jax.block_until_ready(out)

    assert out.shape == (B, T, 1), out.shape
    # softmax rows sum to 1
    assert bool(jnp.allclose(jnp.sum(out[:, :, 0], axis=-1), 1.0, atol=1e-5))
    # matches the plain-JAX reference (loose tolerance: MXU multi-pass f32
    # vs XLA HIGHEST-precision reference; outputs are softmax probabilities)
    ref = _reference(query, user_behavior, params)
    assert bool(jnp.allclose(out, ref, atol=2e-3, rtol=2e-3)), \
        float(jnp.max(jnp.abs(out - ref)))
    print("KERNEL_OK")
</pallas_src>

<mosaic_0001>
module attributes {stable_mosaic.version = 11 : i64} {
  func.func @_lau_kernel(%arg0: i32, %arg1: memref<2x1x32xf32, #tpu.memory_space<vmem>>, %arg2: memref<2x8x32xf32, #tpu.memory_space<vmem>>, %arg3: memref<32x64xf32, #tpu.memory_space<vmem>>, %arg4: memref<32x64xf32, #tpu.memory_space<vmem>>, %arg5: memref<32x64xf32, #tpu.memory_space<vmem>>, %arg6: memref<1x64xf32, #tpu.memory_space<vmem>>, %arg7: memref<64x32xf32, #tpu.memory_space<vmem>>, %arg8: memref<1x32xf32, #tpu.memory_space<vmem>>, %arg9: memref<1x32xf32, #tpu.memory_space<vmem>>, %arg10: memref<1x2x8xf32, #tpu.memory_space<vmem>>) attributes {dimension_semantics = [#tpu.dimension_semantics<parallel>], iteration_bounds = array<i64: 1>, scalar_prefetch = 0 : i64, scratch_operands = 0 : i64, tpu.core_type = #tpu.core_type<tc>, window_params = [{transform_indices = @transform_0, window_bounds = array<i64: 2, 1, 32>}, {transform_indices = @transform_1, window_bounds = array<i64: 2, 8, 32>}, {pipeline_mode = #tpu.pipeline_mode<synchronous>, transform_indices = @transform_2, window_bounds = array<i64: 32, 64>}, {pipeline_mode = #tpu.pipeline_mode<synchronous>, transform_indices = @transform_3, window_bounds = array<i64: 32, 64>}, {pipeline_mode = #tpu.pipeline_mode<synchronous>, transform_indices = @transform_4, window_bounds = array<i64: 32, 64>}, {pipeline_mode = #tpu.pipeline_mode<synchronous>, transform_indices = @transform_5, window_bounds = array<i64: 1, 64>}, {pipeline_mode = #tpu.pipeline_mode<synchronous>, transform_indices = @transform_6, window_bounds = array<i64: 64, 32>}, {pipeline_mode = #tpu.pipeline_mode<synchronous>, transform_indices = @transform_7, window_bounds = array<i64: 1, 32>}, {pipeline_mode = #tpu.pipeline_mode<synchronous>, transform_indices = @transform_8, window_bounds = array<i64: 1, 32>}, {transform_indices = @transform_9, window_bounds = array<i64: 1, 2, 8>}]} {
    %c0 = arith.constant 0 : index
    %c0_0 = arith.constant 0 : index
    %c0_1 = arith.constant 0 : index
    %0 = vector.load %arg1[%c0, %c0_0, %c0_1] : memref<2x1x32xf32, #tpu.memory_space<vmem>>, vector<2x1x32xf32>
    %1 = vector.shape_cast %0 : vector<2x1x32xf32> to vector<2x32xf32>
    %c0_2 = arith.constant 0 : index
    %c0_3 = arith.constant 0 : index
    %c0_4 = arith.constant 0 : index
    %2 = vector.load %arg2[%c0_2, %c0_3, %c0_4] : memref<2x8x32xf32, #tpu.memory_space<vmem>>, vector<2x8x32xf32>
    %3 = vector.broadcast %0 : vector<2x1x32xf32> to vector<2x8x32xf32>
    %4 = arith.mulf %3, %2 : vector<2x8x32xf32>
    %5 = vector.shape_cast %2 : vector<2x8x32xf32> to vector<16x32xf32>
    %6 = vector.shape_cast %4 : vector<2x8x32xf32> to vector<16x32xf32>
    %c0_5 = arith.constant 0 : index
    %c0_6 = arith.constant 0 : index
    %7 = vector.load %arg3[%c0_5, %c0_6] : memref<32x64xf32, #tpu.memory_space<vmem>>, vector<32x64xf32>
    %cst = arith.constant dense<0.000000e+00> : vector<2x64xf32>
    %8 = tpu.matmul %1, %7, %cst {dimension_numbers = #tpu.dot_dimension_numbers<[1], [0], [0], [1], [0, 0, 1, 1], [], []>} : vector<2x32xf32>, vector<32x64xf32>, vector<2x64xf32> -> vector<2x64xf32>
    %c0_7 = arith.constant 0 : index
    %c0_8 = arith.constant 0 : index
    %9 = vector.load %arg6[%c0_7, %c0_8] : memref<1x64xf32, #tpu.memory_space<vmem>>, vector<1x64xf32>
    %10 = vector.broadcast %9 : vector<1x64xf32> to vector<2x64xf32>
    %11 = arith.addf %8, %10 : vector<2x64xf32>
    %c0_9 = arith.constant 0 : index
    %c0_10 = arith.constant 0 : index
    %12 = vector.load %arg4[%c0_9, %c0_10] : memref<32x64xf32, #tpu.memory_space<vmem>>, vector<32x64xf32>
    %cst_11 = arith.constant dense<0.000000e+00> : vector<16x64xf32>
    %13 = tpu.matmul %5, %12, %cst_11 {dimension_numbers = #tpu.dot_dimension_numbers<[1], [0], [0], [1], [0, 0, 1, 1], [], []>} : vector<16x32xf32>, vector<32x64xf32>, vector<16x64xf32> -> vector<16x64xf32>
    %c0_12 = arith.constant 0 : index
    %c0_13 = arith.constant 0 : index
    %14 = vector.load %arg5[%c0_12, %c0_13] : memref<32x64xf32, #tpu.memory_space<vmem>>, vector<32x64xf32>
    %cst_14 = arith.constant dense<0.000000e+00> : vector<16x64xf32>
    %15 = tpu.matmul %6, %14, %cst_14 {dimension_numbers = #tpu.dot_dimension_numbers<[1], [0], [0], [1], [0, 0, 1, 1], [], []>} : vector<16x32xf32>, vector<32x64xf32>, vector<16x64xf32> -> vector<16x64xf32>
    %16 = arith.addf %13, %15 : vector<16x64xf32>
    %17 = vector.shape_cast %16 : vector<16x64xf32> to vector<2x8x64xf32>
    %18 = vector.shape_cast %11 : vector<2x64xf32> to vector<2x1x64xf32>
    %19 = vector.broadcast %18 : vector<2x1x64xf32> to vector<2x8x64xf32>
    %20 = arith.addf %17, %19 : vector<2x8x64xf32>
    %cst_15 = arith.constant 0.000000e+00 : f32
    %21 = vector.broadcast %cst_15 : f32 to vector<2x8x64xf32>
    %22 = arith.maximumf %20, %21 : vector<2x8x64xf32>
    %23 = vector.shape_cast %22 : vector<2x8x64xf32> to vector<16x64xf32>
    %c0_16 = arith.constant 0 : index
    %c0_17 = arith.constant 0 : index
    %24 = vector.load %arg7[%c0_16, %c0_17] : memref<64x32xf32, #tpu.memory_space<vmem>>, vector<64x32xf32>
    %cst_18 = arith.constant dense<0.000000e+00> : vector<16x32xf32>
    %25 = tpu.matmul %23, %24, %cst_18 {dimension_numbers = #tpu.dot_dimension_numbers<[1], [0], [0], [1], [0, 0, 1, 1], [], []>} : vector<16x64xf32>, vector<64x32xf32>, vector<16x32xf32> -> vector<16x32xf32>
    %c0_19 = arith.constant 0 : index
    %c0_20 = arith.constant 0 : index
    %26 = vector.load %arg8[%c0_19, %c0_20] : memref<1x32xf32, #tpu.memory_space<vmem>>, vector<1x32xf32>
    %27 = vector.broadcast %26 : vector<1x32xf32> to vector<16x32xf32>
    %28 = arith.addf %25, %27 : vector<16x32xf32>
    %cst_21 = arith.constant 0.000000e+00 : f32
    %29 = vector.broadcast %cst_21 : f32 to vector<16x32xf32>
    %30 = arith.maximumf %28, %29 : vector<16x32xf32>
    %31 = vector.shape_cast %30 : vector<16x32xf32> to vector<2x8x32xf32>
    %c0_22 = arith.constant 0 : index
    %c0_23 = arith.constant 0 : index
    %32 = vector.load %arg9[%c0_22, %c0_23] : memref<1x32xf32, #tpu.memory_space<vmem>>, vector<1x32xf32>
    %33 = vector.shape_cast %32 : vector<1x32xf32> to vector<1x1x32xf32>
    %34 = vector.broadcast %33 : vector<1x1x32xf32> to vector<2x8x32xf32>
    %35 = arith.mulf %31, %34 : vector<2x8x32xf32>
    %cst_24 = arith.constant dense<0.000000e+00> : vector<2x8xf32>
    %36 = vector.multi_reduction <add>, %35, %cst_24 [2] : vector<2x8x32xf32> to vector<2x8xf32>
    %cst_25 = arith.constant dense<0xFF800000> : vector<2xf32>
    %37 = vector.multi_reduction <maximumf>, %36, %cst_25 [1] : vector<2x8xf32> to vector<2xf32>
    %38 = vector.shape_cast %37 : vector<2xf32> to vector<2x1xf32>
    %39 = vector.broadcast %38 : vector<2x1xf32> to vector<2x8xf32>
    %40 = arith.subf %36, %39 : vector<2x8xf32>
    %41 = math.exp %40 : vector<2x8xf32>
    %cst_26 = arith.constant dense<0.000000e+00> : vector<2xf32>
    %42 = vector.multi_reduction <add>, %41, %cst_26 [1] : vector<2x8xf32> to vector<2xf32>
    %43 = vector.shape_cast %42 : vector<2xf32> to vector<2x1xf32>
    %44 = vector.broadcast %43 : vector<2x1xf32> to vector<2x8xf32>
    %45 = arith.divf %41, %44 : vector<2x8xf32>
    %c0_27 = arith.constant 0 : index
    %c0_28 = arith.constant 0 : index
    %c0_29 = arith.constant 0 : index
    %46 = vector.load %arg10[%c0_27, %c0_28, %c0_29] : memref<1x2x8xf32, #tpu.memory_space<vmem>>, vector<1x2x8xf32>
    %47 = vector.shape_cast %46 : vector<1x2x8xf32> to vector<2x8xf32>
    %48 = vector.shape_cast %45 : vector<2x8xf32> to vector<1x2x8xf32>
    tpu.vector_store %arg10[%c0_27, %c0_28, %c0_29], %48 {strides = array<i32>} : memref<1x2x8xf32, #tpu.memory_space<vmem>>, vector<1x2x8xf32>,
    return
  }
  func.func @transform_0(%arg0: i32) -> (i32, i32, i32) {
    %c0_i32 = arith.constant 0 : i32
    %c0_i32_0 = arith.constant 0 : i32
    %c0_i32_1 = arith.constant 0 : i32
    return %arg0, %c0_i32, %c0_i32_0 : i32, i32, i32
  }
  func.func @transform_1(%arg0: i32) -> (i32, i32, i32) {
    %c0_i32 = arith.constant 0 : i32
    %c0_i32_0 = arith.constant 0 : i32
    %c0_i32_1 = arith.constant 0 : i32
    return %arg0, %c0_i32, %c0_i32_0 : i32, i32, i32
  }
  func.func @transform_2(%arg0: i32) -> (i32, i32) {
    %c0_i32 = arith.constant 0 : i32
    %c0_i32_0 = arith.constant 0 : i32
    %c0_i32_1 = arith.constant 0 : i32
    return %c0_i32, %c0_i32_0 : i32, i32
  }
  func.func @transform_3(%arg0: i32) -> (i32, i32) {
    %c0_i32 = arith.constant 0 : i32
    %c0_i32_0 = arith.constant 0 : i32
    %c0_i32_1 = arith.constant 0 : i32
    return %c0_i32, %c0_i32_0 : i32, i32
  }
  func.func @transform_4(%arg0: i32) -> (i32, i32) {
    %c0_i32 = arith.constant 0 : i32
    %c0_i32_0 = arith.constant 0 : i32
    %c0_i32_1 = arith.constant 0 : i32
    return %c0_i32, %c0_i32_0 : i32, i32
  }
  func.func @transform_5(%arg0: i32) -> (i32, i32) {
    %c0_i32 = arith.constant 0 : i32
    %c0_i32_0 = arith.constant 0 : i32
    %c0_i32_1 = arith.constant 0 : i32
    return %c0_i32, %c0_i32_0 : i32, i32
  }
  func.func @transform_6(%arg0: i32) -> (i32, i32) {
    %c0_i32 = arith.constant 0 : i32
    %c0_i32_0 = arith.constant 0 : i32
    %c0_i32_1 = arith.constant 0 : i32
    return %c0_i32, %c0_i32_0 : i32, i32
  }
  func.func @transform_7(%arg0: i32) -> (i32, i32) {
    %c0_i32 = arith.constant 0 : i32
    %c0_i32_0 = arith.constant 0 : i32
    %c0_i32_1 = arith.constant 0 : i32
    return %c0_i32, %c0_i32_0 : i32, i32
  }
  func.func @transform_8(%arg0: i32) -> (i32, i32) {
    %c0_i32 = arith.constant 0 : i32
    %c0_i32_0 = arith.constant 0 : i32
    %c0_i32_1 = arith.constant 0 : i32
    return %c0_i32, %c0_i32_0 : i32, i32
  }
  func.func @transform_9(%arg0: i32) -> (i32, i32, i32) {
    %c0_i32 = arith.constant 0 : i32
    %c0_i32_0 = arith.constant 0 : i32
    %c0_i32_1 = arith.constant 0 : i32
    return %arg0, %c0_i32, %c0_i32_0 : i32, i32, i32
  }
}

</mosaic_0001>

<llo_original>
// kernel: tpu_custom_call.1
$region0: #{tpu_custom_call.1}
  #allocation0 [shape = 'u32[]', space=smem, size = 0x4, offset = 0x4, fixed_abs, tag = 'smem constant byte address 0x4 - core index']
  #allocation1 [shape = 'u32[72,128]{1,0:T(1,128)}', space=vmem, size = 0x9000, scoped, tag = 'internal scratch']
  %s0 = inlined_call_operand.hbm [shape: f32[2,1,32], index: 0, kind: input, shape index: {}]
  %s1 = inlined_call_operand.hbm [shape: f32[2,8,32], index: 1, kind: input, shape index: {}]
  %s2 = inlined_call_operand.vmem [shape: f32[32,64], index: 2, kind: input, shape index: {}]
  %s3 = inlined_call_operand.vmem [shape: f32[32,64], index: 3, kind: input, shape index: {}]
  %s4 = inlined_call_operand.vmem [shape: f32[32,64], index: 4, kind: input, shape index: {}]
  %s5 = inlined_call_operand.vmem [shape: f32[1,64], index: 5, kind: input, shape index: {}]
  %s6 = inlined_call_operand.vmem [shape: f32[64,32], index: 6, kind: input, shape index: {}]
  %s7 = inlined_call_operand.vmem [shape: f32[1,32], index: 7, kind: input, shape index: {}]
  %s8 = inlined_call_operand.vmem [shape: f32[1,32], index: 8, kind: input, shape index: {}]
  %s9 = inlined_call_operand.hbm [shape: f32[1,2,8], index: 9, kind: output, shape index: {}]
  %s10 = sld [smem:[#allocation0]]
  $region54: #{tpu_custom_call.1} parent=0
    _
  %s12 = ssub.s32 1, %s10
  %s13 = scalar_select 0, %s12, %s10
  $region1: #{tpu_custom_call.1} parent=0
    #allocation2 [shape = 'u8[1024]{0}', space=vmem, size = 0x400, scoped, tag = 'input window, operand 0, single buffered']
    #allocation3 [shape = 's32[1]{0}', space=sflag, size = 0x4, scoped, tag = 'scoped memory for tpu_custom_call.1']
    #allocation4 [shape = 's32[1]{0}', space=sflag, size = 0x4, scoped, tag = 'scoped memory for tpu_custom_call.1']
    #allocation5 [shape = 'u8[8192]{0}', space=vmem, size = 0x2000, scoped, tag = 'input window, operand 1, single buffered']
    #allocation6 [shape = 's32[1]{0}', space=sflag, size = 0x4, scoped, tag = 'scoped memory for tpu_custom_call.1']
    #allocation7 [shape = 'u8[1024]{0}', space=vmem, size = 0x400, scoped, tag = 'output window, operand 0, single buffered']
    %14 = vsyncpa [#allocation3], 0
    %15 = vsyncpa [#allocation6], 0
    %16 = vsyncpa [#allocation4], 0
    // Predicated region
    $region2: #{tpu_custom_call.1} parent=1 // pred_check
      _
    $region3: #{tpu_custom_call.1} parent=1 // pred_check_branch
      %18 = sbr.rel (0) target = $region5
    $region4: #{tpu_custom_call.1} parent=1 // pred_region
      %20 = vsyncadd [#allocation3], 0
      %s21 = sshll.u32 %s0, 4
      %s22 = int_to_ptr.hbm [resolvable:$true] %s21
      %s23 = sshll.u32 [#allocation2], 4
      %s24 = int_to_ptr.vmem [resolvable:$true] %s23
      %29 = dma.hbm_to_vmem [thread:$0]  %s22, 32, %s24, [#allocation3], 16, 16, 1
    $region5: #{tpu_custom_call.1} parent=1 // pred_fallthru
      _
    // Predicated region
    $region6: #{tpu_custom_call.1} parent=1 // pred_check
      _
    $region7: #{tpu_custom_call.1} parent=1 // pred_check_branch
      %31 = sbr.rel (0) target = $region9
    $region8: #{tpu_custom_call.1} parent=1 // pred_region
      %33 = vsyncadd [#allocation6], 0
      %s34 = sshll.u32 %s1, 4
      %s35 = int_to_ptr.hbm [resolvable:$true] %s34
      %s36 = sshll.u32 [#allocation5], 4
      %s37 = int_to_ptr.vmem [resolvable:$true] %s36
      %42 = dma.hbm_to_vmem [thread:$0]  %s35, 256, %s37, [#allocation6], 128, 128, 8
    $region9: #{tpu_custom_call.1} parent=1 // pred_fallthru
      _
    // Predicated region
    $region10: #{tpu_custom_call.1} parent=1 // pred_check
      _
    $region11: #{tpu_custom_call.1} parent=1 // pred_check_branch
      %44 = sbr.rel (0) target = $region13
    $region12: #{tpu_custom_call.1} parent=1 // pred_region
      _
    $region13: #{tpu_custom_call.1} parent=1 // pred_fallthru
      _
    // Predicated region
    $region14: #{tpu_custom_call.1} parent=1 // pred_check
      _
    $region15: #{tpu_custom_call.1} parent=1 // pred_check_branch
      %46 = sbr.rel (0) target = $region17
    $region16: #{tpu_custom_call.1} parent=1 // pred_region
      _
    $region17: #{tpu_custom_call.1} parent=1 // pred_fallthru
      _
    // Predicated region
    $region18: #{tpu_custom_call.1} parent=1 // pred_check
      _
    $region19: #{tpu_custom_call.1} parent=1 // pred_check_branch
      %48 = sbr.rel (0) target = $region21
    $region20: #{tpu_custom_call.1} parent=1 // pred_region
      _
    $region21: #{tpu_custom_call.1} parent=1 // pred_fallthru
      _
    // Predicated region
    $region22: #{tpu_custom_call.1} parent=1 // pred_check
      _
    $region23: #{tpu_custom_call.1} parent=1 // pred_check_branch
      %50 = sbr.rel (0) target = $region25
    $region24: #{tpu_custom_call.1} parent=1 // pred_region
      _
    $region25: #{tpu_custom_call.1} parent=1 // pred_fallthru
      _
    // Predicated region
    $region26: #{tpu_custom_call.1} parent=1 // pred_check
      _
    $region27: #{tpu_custom_call.1} parent=1 // pred_check_branch
      %52 = sbr.rel (0) target = $region29
    $region28: #{tpu_custom_call.1} parent=1 // pred_region
      _
    $region29: #{tpu_custom_call.1} parent=1 // pred_fallthru
      _
    // Predicated region
    $region30: #{tpu_custom_call.1} parent=1 // pred_check
      _
    $region31: #{tpu_custom_call.1} parent=1 // pred_check_branch
      %54 = sbr.rel (0) target = $region33
    $region32: #{tpu_custom_call.1} parent=1 // pred_region
      _
    $region33: #{tpu_custom_call.1} parent=1 // pred_fallthru
      _
    // Predicated region
    $region34: #{tpu_custom_call.1} parent=1 // pred_check
      _
    $region35: #{tpu_custom_call.1} parent=1 // pred_check_branch
      %56 = sbr.rel (0) target = $region37
    $region36: #{tpu_custom_call.1} parent=1 // pred_region
      _
    $region37: #{tpu_custom_call.1} parent=1 // pred_fallthru
      _
    // Predicated region
    $region38: #{tpu_custom_call.1} parent=1 // pred_check
      _
    $region39: #{tpu_custom_call.1} parent=1 // pred_check_branch
      %58 = sbr.rel (0) target = $region41
    $region40: #{tpu_custom_call.1} parent=1 // pred_region
      %60 = dma.done [#allocation3], 32
    $region41: #{tpu_custom_call.1} parent=1 // pred_fallthru
      _
    // Predicated region
    $region42: #{tpu_custom_call.1} parent=1 // pred_check
      _
    $region43: #{tpu_custom_call.1} parent=1 // pred_check_branch
      %62 = sbr.rel (0) target = $region45
    $region44: #{tpu_custom_call.1} parent=1 // pred_region
      %64 = dma.done [#allocation6], 256
    $region45: #{tpu_custom_call.1} parent=1 // pred_fallthru
      _
    %v65 = vld [vmem:[#allocation2] sm:$0x1]
    %v66 = vld [vmem:[#allocation2 + $0x1] sm:$0x1]
    %v67 = vld [vmem:[#allocation5] sm:$0xff]
    %v68 = vld [vmem:[#allocation5 + $0x8] sm:$0xff]
    %v71 = vperm.slane %v65, 0
    %v72 = vperm.slane %v66, 0
    %v75 = vmul.f32 %v71, %v67
    %v76 = vmul.f32 %v72, %v68
    %v77 = vld [vmem:[%s2] sm:$0xff]
    %v78 = vld [vmem:[%s2 + $0x8] sm:$0xff]
    %v79 = vld [vmem:[%s2 + $0x10] sm:$0xff]
    %v80 = vld [vmem:[%s2 + $0x18] sm:$0xff]
    %v81 = vld [vmem:[%s5] sm:$0x1]
    %v83 = vperm.slane %v81, 0
    %85 = vst [vmem:[#allocation1] ss:$9 sm:$0xff] %v65
    %s86 = scalar_lea.vmem [#allocation1], 1
    %87 = vst [vmem:[%s86] ss:$9 sm:$0xff] %v66
    %v88 = vld [vmem:[#allocation1] sm:$0xff]
    %vm89 = vcmask 261120
    %v90 = vsel %vm89, %v88, 0
    %92 = vmatpush.msra.mxu0 0.0
    %93 = vmatpush.msra.mxu0 0.0
    %94 = vmatpush.msra.mxu0 0.0
    %95 = vmatpush.msra.mxu0 0.0
    %96 = vmatpush.msra.mxu0 0.0
    %97 = vmatpush.msra.mxu0 0.0
    %98 = vmatpush.msra.mxu0 0.0
    %99 = vmatpush.msra.mxu0 0.0
    %100 = vmatpush.msra.mxu0 0.0
    %101 = vmatpush.msra.mxu0 0.0
    %102 = vmatpush.msra.mxu0 0.0
    %103 = vmatpush.msra.mxu0 0.0
    %104 = vmatpush.msra.mxu0 %v80
    %105 = vmatpush.msra.mxu0 %v79
    %106 = vmatpush.msra.mxu0 %v78
    %107 = vmatpush.msra.mxu0 %v77
    %108 = vmatmul.f32.gmra.mxu0 %v90
    %v109 = vpop.f32.mrf.mxu0
    %v110 = vadd.f32 %v83, %v109
    %111 = vdwg.mxu0
    %v112 = vld [vmem:[%s3] sm:$0xff]
    %v113 = vld [vmem:[%s3 + $0x8] sm:$0xff]
    %v114 = vld [vmem:[%s3 + $0x10] sm:$0xff]
    %v115 = vld [vmem:[%s3 + $0x18] sm:$0xff]
    %v116 = vld [vmem:[%s4] sm:$0xff]
    %v117 = vld [vmem:[%s4 + $0x8] sm:$0xff]
    %v118 = vld [vmem:[%s4 + $0x10] sm:$0xff]
    %v119 = vld [vmem:[%s4 + $0x18] sm:$0xff]
    %v121 = vsel %vm89, %v75, 0
    %v124 = vsel %vm89, %v76, 0
    %126 = vmatpush.msra.mxu0 0.0
    %127 = vmatpush.msra.mxu0 0.0
    %128 = vmatpush.msra.mxu0 0.0
    %129 = vmatpush.msra.mxu0 0.0
    %130 = vmatpush.msra.mxu0 0.0
    %131 = vmatpush.msra.mxu0 0.0
    %132 = vmatpush.msra.mxu0 0.0
    %133 = vmatpush.msra.mxu0 0.0
    %134 = vmatpush.msra.mxu0 0.0
    %135 = vmatpush.msra.mxu0 0.0
    %136 = vmatpush.msra.mxu0 0.0
    %137 = vmatpush.msra.mxu0 0.0
    %138 = vmatpush.msra.mxu0 %v119
    %139 = vmatpush.msra.mxu0 %v118
    %140 = vmatpush.msra.mxu0 %v117
    %141 = vmatpush.msra.mxu0 %v116
    %142 = vmatmul.f32.gmra.mxu0 %v121
    %v143 = vpop.f32.mrf.mxu0
    %v144 = vadd.f32 0.0, %v143
    %145 = vmatmul.f32.gmra.mxu0 %v124
    %v146 = vpop.f32.mrf.mxu0
    %v147 = vadd.f32 0.0, %v146
    %148 = vdwg.mxu0
    %v150 = vsel %vm89, %v67, 0
    %v153 = vsel %vm89, %v68, 0
    %155 = vmatpush.msra.mxu0 0.0
    %156 = vmatpush.msra.mxu0 0.0
    %157 = vmatpush.msra.mxu0 0.0
    %158 = vmatpush.msra.mxu0 0.0
    %159 = vmatpush.msra.mxu0 0.0
    %160 = vmatpush.msra.mxu0 0.0
    %161 = vmatpush.msra.mxu0 0.0
    %162 = vmatpush.msra.mxu0 0.0
    %163 = vmatpush.msra.mxu0 0.0
    %164 = vmatpush.msra.mxu0 0.0
    %165 = vmatpush.msra.mxu0 0.0
    %166 = vmatpush.msra.mxu0 0.0
    %167 = vmatpush.msra.mxu0 %v115
    %168 = vmatpush.msra.mxu0 %v114
    %169 = vmatpush.msra.mxu0 %v113
    %170 = vmatpush.msra.mxu0 %v112
    %171 = vmatmul.f32.gmra.mxu0 %v150
    %v172 = vpop.f32.mrf.mxu0
    %v173 = vadd.f32 %v144, %v172
    %174 = vmatmul.f32.gmra.mxu0 %v153
    %v175 = vpop.f32.mrf.mxu0
    %v176 = vadd.f32 %v147, %v175
    %177 = vdwg.mxu0
    %v179 = vrot.slane %v110, 1
    %v180 = vperm.slane %v110, 0
    %v181 = vperm.slane %v179, 0
    %v184 = vadd.f32 %v173, %v180
    %v185 = vadd.f32 %v176, %v181
    %v186 = vmax.f32 %v184, 0.0
    %v187 = vmax.f32 %v185, 0.0
    %v188 = vld [vmem:[%s6] sm:$0xff]
    %v189 = vld [vmem:[%s6 + $0x8] sm:$0xff]
    %v190 = vld [vmem:[%s6 + $0x10] sm:$0xff]
    %v191 = vld [vmem:[%s6 + $0x18] sm:$0xff]
    %v192 = vld [vmem:[%s6 + $0x20] sm:$0xff]
    %v193 = vld [vmem:[%s6 + $0x28] sm:$0xff]
    %v194 = vld [vmem:[%s6 + $0x30] sm:$0xff]
    %v195 = vld [vmem:[%s6 + $0x38] sm:$0xff]
    %v196 = vld [vmem:[%s7] sm:$0x1]
    %v198 = vperm.slane %v196, 0
    %vm200 = vcmask 523264
    %v202 = vsel %vm200, %v186, 0
    %v205 = vsel %vm200, %v187, 0
    %207 = vmatpush.msra.mxu0 0.0
    %208 = vmatpush.msra.mxu0 0.0
    %209 = vmatpush.msra.mxu0 0.0
    %210 = vmatpush.msra.mxu0 0.0
    %211 = vmatpush.msra.mxu0 0.0
    %212 = vmatpush.msra.mxu0 0.0
    %213 = vmatpush.msra.mxu0 0.0
    %214 = vmatpush.msra.mxu0 0.0
    %215 = vmatpush.msra.mxu0 %v195
    %216 = vmatpush.msra.mxu0 %v194
    %217 = vmatpush.msra.mxu0 %v193
    %218 = vmatpush.msra.mxu0 %v192
    %219 = vmatpush.msra.mxu0 %v191
    %220 = vmatpush.msra.mxu0 %v190
    %221 = vmatpush.msra.mxu0 %v189
    %222 = vmatpush.msra.mxu0 %v188
    %223 = vmatmul.f32.gmra.mxu0 %v202
    %v224 = vpop.f32.mrf.mxu0
    %v225 = vadd.f32 %v198, %v224
    %226 = vmatmul.f32.gmra.mxu0 %v205
    %v227 = vpop.f32.mrf.mxu0
    %v228 = vadd.f32 %v198, %v227
    %229 = vdwg.mxu0
    %v230 = vmax.f32 %v225, 0.0
    %v231 = vmax.f32 %v228, 0.0
    %v232 = vld [vmem:[%s8] sm:$0x1]
    %v234 = vperm.slane %v232, 0
    %v236 = vmul.f32 %v230, %v234
    %v237 = vmul.f32 %v231, %v234
    %v238 = vsel %vm89, %v236, 0.0
    %239 = vadd.xlane.f32.xlu0 %v238
    %v240 = vpop.xlane.xlu0 %239
    %v241 = vsel %vm89, %v237, 0.0
    %242 = vadd.xlane.f32.xlu0 %v241
    %v243 = vpop.xlane.xlu0 %242
    %v246 = vlaneseq
    %v247 = vand.u32 %v246, 127
    %v248 = vperm.slane %v240, %v247
    %v249 = vperm.slane %v243, %v247
    %vm250 = vcmask 1041409
    %v251 = vsel %vm250, %v249, %v248
    %vm253 = vcmask 58368
    %v254 = vsel %vm253, %v251, -inf
    %255 = vmax.xlane.f32.xlu0 %v254
    %v256 = vpop.xlane.xlu0 %255
    %v258 = vperm.slane %v256, 0
    %v259 = vperm.slane %v256, 1
    %v262 = vsub.f32 %v240, %v258
    %v263 = vsub.f32 %v243, %v259
    %v264 = vmul.f32 %v262, 1.442695
    %v265 = vpow.pop %v264
    %v266 = vmul.f32 %v263, 1.442695
    %v267 = vpow.pop %v266
    %270 = vset.pattern.permute.xlu0 0
    %271 = vperm.xlu0 %270, %v265
    %v272 = vpop.permute.xlu0 %271
    %273 = vset.pattern.permute.xlu0 0
    %274 = vperm.xlu0 %273, %v267
    %v275 = vpop.permute.xlu0 %274
    %v276 = vperm.slane %v272, %v247
    %v277 = vperm.slane %v275, %v247
    %v278 = vsel %vm250, %v277, %v276
    %v280 = vsel %vm253, %v278, 0.0
    %281 = vadd.xlane.f32.xlu0 %v280
    %v282 = vpop.xlane.xlu0 %281
    %v284 = vperm.slane %v282, 0
    %v285 = vperm.slane %v282, 1
    %v288 = vrcp.pop %v284
    %v289 = vmul.f32 %v284, %v288
    %v290 = vsub.f32 1.0, %v289
    %v291 = vmul.f32 %v288, %v290
    %v292 = vadd.f32 %v288, %v291
    %vm293 = vweird.f32 %v284
    %vm294 = vweird.f32 %v288
    %vm295 = vmor %vm293, %vm294
    %v296 = vsel %vm295, %v288, %v292
    %v297 = vand.u32 2147483647, %v284
    %vm298 = vcmp.eq.f32.partialorder %v297, 8.507059e+37
    %v299 = vand.u32 %v284, 2147483648
    %v300 = vor.u32 1.1754944e-38, %v299
    %v301 = vsel %vm298, %v300, %v296
    %v302 = vmul.f32 %v265, %v301
    %v303 = vrcp.pop %v285
    %v304 = vmul.f32 %v285, %v303
    %v305 = vsub.f32 1.0, %v304
    %v306 = vmul.f32 %v303, %v305
    %v307 = vadd.f32 %v303, %v306
    %vm308 = vweird.f32 %v285
    %vm309 = vweird.f32 %v303
    %vm310 = vmor %vm308, %vm309
    %v311 = vsel %vm310, %v303, %v307
    %v312 = vand.u32 2147483647, %v285
    %vm313 = vcmp.eq.f32.partialorder %v312, 8.507059e+37
    %v314 = vand.u32 %v285, 2147483648
    %v315 = vor.u32 1.1754944e-38, %v314
    %v316 = vsel %vm313, %v315, %v311
    %v317 = vmul.f32 %v267, %v316
    %320 = vset.pattern.permute.xlu0 0
    %321 = vperm.xlu0 %320, %v302
    %v322 = vpop.permute.xlu0 %321
    %323 = vset.pattern.permute.xlu0 0
    %324 = vperm.xlu0 %323, %v317
    %v325 = vpop.permute.xlu0 %324
    %v326 = vperm.slane %v322, %v247
    %v327 = vperm.slane %v325, %v247
    %v328 = vsel %vm250, %v327, %v326
    %330 = vst.msk [vmem:[#allocation7] sm:$0x3] %vm253, %v328
    // Predicated region
    $region46: #{tpu_custom_call.1} parent=1 // pred_check
      _
    $region47: #{tpu_custom_call.1} parent=1 // pred_check_branch
      %332 = sbr.rel (0) target = $region49
    $region48: #{tpu_custom_call.1} parent=1 // pred_region
      %334 = vsyncadd [#allocation4], 0
      %s336 = sshll.u32 [#allocation7], 4
      %s337 = int_to_ptr.vmem [resolvable:$true] %s336
      %s338 = sshll.u32 %s9, 4
      %s339 = int_to_ptr.hbm [resolvable:$true] %s338
      %341 = dma.vmem_to_hbm [thread:$0]  %s337, 32, %s339, [#allocation4]
    $region49: #{tpu_custom_call.1} parent=1 // pred_fallthru
      _
    // Predicated region
    $region50: #{tpu_custom_call.1} parent=1 // pred_check
      _
    $region51: #{tpu_custom_call.1} parent=1 // pred_check_branch
      %343 = sbr.rel (0) target = $region53
    $region52: #{tpu_custom_call.1} parent=1 // pred_region
      %345 = dma.done [#allocation4], 32
    $region53: #{tpu_custom_call.1} parent=1 // pred_fallthru
      _
    %346 = vsyncpa [#allocation3], 1
    %347 = vsyncpa [#allocation6], 1
    %348 = vsyncpa [#allocation4], 1

</llo_original>
